<compile_context>
chip_gen: v5e
topology: v5e:2x2
jax: 0.10.0
libtpu: 0.0.40
codegen_flags: <defaults>
</compile_context>

<pallas_src>
import jax
import jax.numpy as jnp
from jax.experimental import pallas as pl
from jax.experimental.pallas import tpu as pltpu


# ----------------------------------------------------------------------------
# Primary path: zero-DMA aliased pass-through (no grid, no tiling, no copy).
# ----------------------------------------------------------------------------
def _passthrough_kernel(x_ref, o_ref):
    # Output aliases the input buffer; no bytes need to move.  touch() pins a
    # fake read+write dependency on the aliased output so the otherwise-empty
    # kernel stays well-formed and correctly ordered.
    del x_ref
    pltpu.touch(o_ref)


def _passthrough(x: jax.Array) -> jax.Array:
    return pl.pallas_call(
        _passthrough_kernel,
        out_shape=jax.ShapeDtypeStruct(x.shape, x.dtype),
        in_specs=[pl.BlockSpec(memory_space=pl.ANY)],
        out_specs=pl.BlockSpec(memory_space=pl.ANY),
        # Alias output to input: under a donating jit the identity is in-place
        # and the kernel issues zero DMAs.
        input_output_aliases={0: 0},
    )(x)


# ----------------------------------------------------------------------------
# Fallback path: HBM-roofline tiled copy (only used if the zero-DMA variant is
# rejected by the current compiler).  Byte-budgeted so it compiles on
# v5e/v6e/v7x with default scoped-VMEM limits for any (B, Z).
# ----------------------------------------------------------------------------
def _copy_kernel(x_ref, o_ref):
    o_ref[...] = x_ref[...]


def _tiled_copy(x: jax.Array) -> jax.Array:
    B, Z = x.shape
    n = B * Z

    # Lane-dense slab (last dim = 128) avoids masked vst.msk partial stores.
    if n % 128 == 0 and n >= 128:
        flat = jnp.reshape(x, (n // 128, 128))
    else:
        # TODO(synk): for large n not divisible by 128, split a 128-aligned
        # prefix through the lane-dense kernel and patch the tail in the
        # wrapper instead of running the whole copy at cols=Z.
        flat = x
    rows, cols = flat.shape

    itemsize = jnp.dtype(x.dtype).itemsize
    # Sublane-packing multiple: 8 for f32, 16 for bf16, 32 for int8.
    sub = max(8, 32 // itemsize)

    # Per-buffer byte budget.  4x (double-buffered in + out) of 2 MiB = 8 MiB,
    # safely under v5e's 16 MiB scoped default and every other generation.
    budget = 2 << 20
    target_rows = max(1, budget // max(1, cols * itemsize))
    if rows <= sub:
        tile_rows = rows                      # full extent: always legal
    else:
        tile_rows = min(rows, max(sub, (target_rows // sub) * sub))

    grid = (pl.cdiv(rows, tile_rows),)

    copied = pl.pallas_call(
        _copy_kernel,
        out_shape=jax.ShapeDtypeStruct((rows, cols), x.dtype),
        grid=grid,
        in_specs=[pl.BlockSpec((tile_rows, cols), lambda i: (i, 0))],
        out_specs=pl.BlockSpec((tile_rows, cols), lambda i: (i, 0)),
        # No input/output alias here: for non-donating callers an alias would
        # force a hidden defensive copy (2x traffic).
        cost_estimate=pl.CostEstimate(
            flops=0,
            transcendentals=0,
            bytes_accessed=2 * rows * cols * itemsize,
        ),
        compiler_params=pltpu.CompilerParams(
            dimension_semantics=("parallel",),   # shard rows across v7x's 2 TCs
        ),
    )(flat)
    return jnp.reshape(copied, (B, Z))


# ----------------------------------------------------------------------------
# Probe the zero-DMA variant once (eagerly) and cache the decision.
# ----------------------------------------------------------------------------
_ZERO_DMA_OK = None


def _zero_dma_supported() -> bool:
    global _ZERO_DMA_OK
    if _ZERO_DMA_OK is None:
        try:
            probe = jnp.zeros((8, 128), jnp.float32)
            jax.block_until_ready(_passthrough(probe))
            _ZERO_DMA_OK = True
        except Exception:
            _ZERO_DMA_OK = False
    return _ZERO_DMA_OK


def unflatten(x: jax.Array) -> jax.Array:
    """Pallas equivalent of UnFlatten.forward: (B, Z) -> (B, Z, 1, 1)."""
    B, Z = x.shape
    if _zero_dma_supported():
        y = _passthrough(x)
    else:
        y = _tiled_copy(x)
    # Glue: add trailing singleton H, W dims (pure metadata).
    return jnp.reshape(y, (B, Z, 1, 1))


if __name__ == "__main__":
    key = jax.random.PRNGKey(0)
    B, Z = 2, 32
    x = jax.random.normal(key, (B, Z), dtype=jnp.float32)

    # Reference semantics (a reshape).
    ref = jax.block_until_ready(jnp.reshape(x, (B, Z, 1, 1)))

    out = unflatten(x)
    out = jax.block_until_ready(out)

    assert out.shape == (B, Z, 1, 1), out.shape
    assert out.dtype == x.dtype
    assert jnp.array_equal(out, ref)

    print("KERNEL_OK")
</pallas_src>

<mosaic_0001>
module attributes {stable_mosaic.version = 11 : i64} {
  func.func @_passthrough_kernel(%arg0: memref<8x128xf32, #tpu.memory_space<any>>, %arg1: memref<8x128xf32, #tpu.memory_space<any>>) attributes {dimension_semantics = [], scalar_prefetch = 0 : i64, scratch_operands = 0 : i64, tpu.core_type = #tpu.core_type<tc>} {
    return
  }
}

module attributes {stable_mosaic.version = 11 : i64} {
  func.func @_copy_kernel(%arg0: i32, %arg1: memref<2x32xf32, #tpu.memory_space<vmem>>, %arg2: memref<2x32xf32, #tpu.memory_space<vmem>>) attributes {dimension_semantics = [#tpu.dimension_semantics<parallel>], iteration_bounds = array<i64: 1>, scalar_prefetch = 0 : i64, scratch_operands = 0 : i64, tpu.core_type = #tpu.core_type<tc>, window_params = [{transform_indices = @transform_0, window_bounds = array<i64: 2, 32>}, {transform_indices = @transform_1, window_bounds = array<i64: 2, 32>}]} {
    %c0 = arith.constant 0 : index
    %c0_0 = arith.constant 0 : index
    %0 = vector.load %arg1[%c0, %c0_0] : memref<2x32xf32, #tpu.memory_space<vmem>>, vector<2x32xf32>
    %c0_1 = arith.constant 0 : index
    %c0_2 = arith.constant 0 : index
    %1 = vector.load %arg2[%c0_1, %c0_2] : memref<2x32xf32, #tpu.memory_space<vmem>>, vector<2x32xf32>
    tpu.vector_store %arg2[%c0_1, %c0_2], %0 {strides = array<i32>} : memref<2x32xf32, #tpu.memory_space<vmem>>, vector<2x32xf32>,
    return
  }
  func.func @transform_0(%arg0: i32) -> (i32, i32) {
    %c0_i32 = arith.constant 0 : i32
    %c0_i32_0 = arith.constant 0 : i32
    return %arg0, %c0_i32 : i32, i32
  }
  func.func @transform_1(%arg0: i32) -> (i32, i32) {
    %c0_i32 = arith.constant 0 : i32
    %c0_i32_0 = arith.constant 0 : i32
    return %arg0, %c0_i32 : i32, i32
  }
}

</mosaic_0001>

<llo_original>
// kernel: tpu_custom_call.1
$region0: #{tpu_custom_call.1}
  #allocation0 [shape = 'u32[]', space=smem, size = 0x4, offset = 0x4, fixed_abs, tag = 'smem constant byte address 0x4 - core index']
  #allocation1 [shape = 'u32[72,128]{1,0:T(1,128)}', space=vmem, size = 0x9000, scoped, tag = 'internal scratch']
  %s0 = inlined_call_operand.hbm [shape: f32[8,128], index: 0, kind: input, shape index: {}, may-alias: {0,1}]
  %s1 = inlined_call_operand.hbm [shape: f32[8,128], index: 1, kind: output, shape index: {}, may-alias: {0,1}]
  %s2 = sld [smem:[#allocation0]]
  $region2: #{tpu_custom_call.1} parent=0
    _
  %s4 = ssub.s32 1, %s2
  %s5 = scalar_select 0, %s4, %s2

// kernel: tpu_custom_call.1
$region0: #{tpu_custom_call.1}
  #allocation0 [shape = 'u32[]', space=smem, size = 0x4, offset = 0x4, fixed_abs, tag = 'smem constant byte address 0x4 - core index']
  #allocation1 [shape = 'u32[72,128]{1,0:T(1,128)}', space=vmem, size = 0x9000, scoped, tag = 'internal scratch']
  %s0 = inlined_call_operand.hbm [shape: f32[2,32], index: 0, kind: input, shape index: {}]
  %s1 = inlined_call_operand.hbm [shape: f32[2,32], index: 1, kind: output, shape index: {}]
  %s2 = sld [smem:[#allocation0]]
  $region18: #{tpu_custom_call.1} parent=0
    _
  %s4 = ssub.s32 1, %s2
  %s5 = scalar_select 0, %s4, %s2
  $region1: #{tpu_custom_call.1} parent=0
    #allocation2 [shape = 'u8[1024]{0}', space=vmem, size = 0x400, scoped, tag = 'input window, operand 0, single buffered']
    #allocation3 [shape = 's32[1]{0}', space=sflag, size = 0x4, scoped, tag = 'scoped memory for tpu_custom_call.1']
    #allocation4 [shape = 's32[1]{0}', space=sflag, size = 0x4, scoped, tag = 'scoped memory for tpu_custom_call.1']
    #allocation5 [shape = 'u8[1024]{0}', space=vmem, size = 0x400, scoped, tag = 'output window, operand 0, single buffered']
    %6 = vsyncpa [#allocation3], 0
    %7 = vsyncpa [#allocation4], 0
    // Predicated region
    $region2: #{tpu_custom_call.1} parent=1 // pred_check
      _
    $region3: #{tpu_custom_call.1} parent=1 // pred_check_branch
      %9 = sbr.rel (0) target = $region5
    $region4: #{tpu_custom_call.1} parent=1 // pred_region
      %11 = vsyncadd [#allocation3], 0
      %s13 = sshll.u32 %s0, 4
      %s14 = int_to_ptr.hbm [resolvable:$true] %s13
      %s15 = sshll.u32 [#allocation2], 4
      %s16 = int_to_ptr.vmem [resolvable:$true] %s15
      %18 = dma.hbm_to_vmem [thread:$0]  %s14, 32, %s16, [#allocation3]
    $region5: #{tpu_custom_call.1} parent=1 // pred_fallthru
      _
    // Predicated region
    $region6: #{tpu_custom_call.1} parent=1 // pred_check
      _
    $region7: #{tpu_custom_call.1} parent=1 // pred_check_branch
      %20 = sbr.rel (0) target = $region9
    $region8: #{tpu_custom_call.1} parent=1 // pred_region
      %22 = dma.done [#allocation3], 32
    $region9: #{tpu_custom_call.1} parent=1 // pred_fallthru
      _
    %v23 = vld [vmem:[#allocation2] sm:$0x3]
    %vm24 = vcmask 254976
    %25 = vst.msk [vmem:[#allocation5] sm:$0x3] %vm24, %v23
    // Predicated region
    $region10: #{tpu_custom_call.1} parent=1 // pred_check
      _
    $region11: #{tpu_custom_call.1} parent=1 // pred_check_branch
      %27 = sbr.rel (0) target = $region13
    $region12: #{tpu_custom_call.1} parent=1 // pred_region
      %29 = vsyncadd [#allocation4], 0
      %s31 = sshll.u32 [#allocation5], 4
      %s32 = int_to_ptr.vmem [resolvable:$true] %s31
      %s33 = sshll.u32 %s1, 4
      %s34 = int_to_ptr.hbm [resolvable:$true] %s33
      %36 = dma.vmem_to_hbm [thread:$0]  %s32, 32, %s34, [#allocation4]
    $region13: #{tpu_custom_call.1} parent=1 // pred_fallthru
      _
    // Predicated region
    $region14: #{tpu_custom_call.1} parent=1 // pred_check
      _
    $region15: #{tpu_custom_call.1} parent=1 // pred_check_branch
      %38 = sbr.rel (0) target = $region17
    $region16: #{tpu_custom_call.1} parent=1 // pred_region
      %40 = dma.done [#allocation4], 32
    $region17: #{tpu_custom_call.1} parent=1 // pred_fallthru
      _
    %41 = vsyncpa [#allocation3], 1
    %42 = vsyncpa [#allocation4], 1

</llo_original>
